<compile_context>
chip_gen: v7x
topology: tpu7x:2x2x1
jax: 0.10.0
libtpu: 0.0.40
codegen_flags: <defaults>
</compile_context>

<pallas_src>
import functools

import jax
import jax.numpy as jnp
from jax.experimental import pallas as pl
from jax.experimental.pallas import tpu as pltpu


_N_SLOTS = 8                       # row-DMA ring slots (large-vocab path)
_LOOKAHEAD = _N_SLOTS - 1          # rows kept in flight (1 slot of WAR slack)
_TILE_OUT_BYTES = 4 * 1024 * 1024  # target bytes of one (TB, E) output tile


def _round_up(x, m):
    return ((x + m - 1) // m) * m


def _vmem_capacity_bytes():
    """Physical VMEM per TensorCore; conservative fallback if unavailable."""
    try:
        cap = int(getattr(pltpu.get_tpu_info(), "vmem_capacity_bytes", 0))
        if cap > 0:
            return cap
    except Exception:
        pass
    return 64 * 1024 * 1024        # v7x per-core size: safe on every generation


def _clamp_vmem_limit(need_bytes, vmem_cap):
    return int(min(max(need_bytes, 32 << 20), int(0.92 * vmem_cap)))


# ----------------------------------------------------------------------------
# Kernel bodies
# ----------------------------------------------------------------------------

def _embed_onehot_kernel(ids_ref, table_ref, out_ref, *, scale):
    """Tiny-vocab path: one-hot MXU matmul for a (TB, E) token tile."""
    # ids_ref:   (TB, 1) int32 (VMEM)
    # table_ref: (V, E)  full embedding table, VMEM-resident across the grid
    # out_ref:   (TB, E)
    tb = out_ref.shape[0]
    v = table_ref.shape[0]
    one_hot = (ids_ref[...] ==
               jax.lax.broadcasted_iota(jnp.int32, (tb, v), 1)
               ).astype(table_ref.dtype)
    acc = jnp.dot(one_hot, table_ref[...], preferred_element_type=jnp.float32)
    out_ref[...] = (acc * scale).astype(out_ref.dtype)


def _embed_gather_kernel(ids_ref, table_ref, out_ref, *, scale, token_block):
    """Resident-table path: unrolled row gather, scale hoisted out of the loop."""
    # ids_ref:   (n_pad,) int32 scalar-prefetch ids in SMEM
    # table_ref: (V, E) full embedding table, VMEM-resident across the grid
    # out_ref:   (TB, E)
    base = pl.program_id(0) * token_block

    def body(j, carry):
        row = ids_ref[base + j]
        out_ref[pl.ds(j, 1), :] = table_ref[pl.ds(row, 1), :]
        return carry

    # Unroll so the LLO scheduler overlaps row-address math / loads / stores.
    jax.lax.fori_loop(0, token_block, body, 0, unroll=8)
    # One dense scale pass over the whole (TB, E) tile (cheap VPU filler)
    # instead of a masked (1, E) multiply+cast per row.
    out_ref[...] = (out_ref[...].astype(jnp.float32) * scale).astype(out_ref.dtype)


def _embed_row_dma_kernel(ids_ref, table_ref, out_ref, rowbuf, sem, *,
                          scale, token_block):
    """Large-vocab path: manual multi-slot row DMAs from the HBM-resident table."""
    # ids_ref:   (n_pad,) int32 scalar-prefetch ids in SMEM
    # table_ref: (V, E) embedding table left in HBM (memory_space=pl.ANY)
    # out_ref:   (TB, E) dense output tile (VMEM, auto-pipelined writeback)
    # rowbuf:    (_N_SLOTS, E) VMEM ring of row landing slots
    # sem:       (_N_SLOTS,) DMA semaphores
    base = pl.program_id(0) * token_block

    def start_row(j, slot):
        row = ids_ref[base + j]
        pltpu.make_async_copy(table_ref.at[pl.ds(row, 1), :],
                              rowbuf.at[pl.ds(slot, 1), :],
                              sem.at[slot]).start()

    # Prologue: put the first LOOKAHEAD rows in flight.
    for j in range(min(_LOOKAHEAD, token_block)):
        start_row(j, j)

    def body(j, carry):
        slot = j % _N_SLOTS
        # Wait for this row's DMA, copy it into the dense output tile.
        pltpu.make_async_copy(table_ref.at[pl.ds(0, 1), :],     # shape-only src
                              rowbuf.at[pl.ds(slot, 1), :],
                              sem.at[slot]).wait()
        out_ref[pl.ds(j, 1), :] = rowbuf[pl.ds(slot, 1), :]
        next_j = j + _LOOKAHEAD

        @pl.when(next_j < token_block)
        def _():
            # Target slot was consumed one iteration ago -> 1 iter of WAR slack.
            start_row(next_j, next_j % _N_SLOTS)
        return carry

    jax.lax.fori_loop(0, token_block, body, 0, unroll=4)
    out_ref[...] = (out_ref[...].astype(jnp.float32) * scale).astype(out_ref.dtype)


# ----------------------------------------------------------------------------
# Per-chunk pallas_call builders
# ----------------------------------------------------------------------------

def _call_onehot(ids, table, *, tb, scale, vmem_limit):
    n = ids.shape[0]
    v, e = table.shape
    n_pad = _round_up(n, tb)
    if n_pad != n:
        ids = jnp.pad(ids, (0, n_pad - n))           # padded rows are discarded
    out = pl.pallas_call(
        functools.partial(_embed_onehot_kernel, scale=scale),
        out_shape=jax.ShapeDtypeStruct((n_pad, e), table.dtype),
        grid_spec=pltpu.PrefetchScalarGridSpec(
            num_scalar_prefetch=0,
            grid=(n_pad // tb,),
            in_specs=[
                pl.BlockSpec((tb, 1), lambda t: (t, 0)),   # token-id tile
                # Full table, constant block index -> stays VMEM-resident.
                # TODO(synk): pipeline_mode=pl.Buffered(1) here would halve the
                # table's VMEM footprint; budgets below assume 2x to stay safe.
                pl.BlockSpec((v, e), lambda t: (0, 0)),
            ],
            out_specs=pl.BlockSpec((tb, e), lambda t: (t, 0)),
        ),
        compiler_params=pltpu.CompilerParams(
            dimension_semantics=("parallel",),
            vmem_limit_bytes=vmem_limit),
    )(ids.reshape(n_pad, 1), table)
    return out[:n]


def _call_gather(ids, table, *, tb, scale, vmem_limit):
    n = ids.shape[0]
    v, e = table.shape
    n_pad = _round_up(n, tb)
    if n_pad != n:
        ids = jnp.pad(ids, (0, n_pad - n))
    out = pl.pallas_call(
        functools.partial(_embed_gather_kernel, scale=scale, token_block=tb),
        out_shape=jax.ShapeDtypeStruct((n_pad, e), table.dtype),
        grid_spec=pltpu.PrefetchScalarGridSpec(
            num_scalar_prefetch=1,                          # ids -> SMEM
            grid=(n_pad // tb,),
            in_specs=[pl.BlockSpec((v, e), lambda t, ids_ref: (0, 0))],
            out_specs=pl.BlockSpec((tb, e), lambda t, ids_ref: (t, 0)),
        ),
        compiler_params=pltpu.CompilerParams(
            dimension_semantics=("parallel",),
            vmem_limit_bytes=vmem_limit),
    )(ids, table)
    return out[:n]


def _call_row_dma(ids, table, *, tb, scale, vmem_limit):
    n = ids.shape[0]
    v, e = table.shape
    n_pad = _round_up(n, tb)
    if n_pad != n:
        ids = jnp.pad(ids, (0, n_pad - n))
    out = pl.pallas_call(
        functools.partial(_embed_row_dma_kernel, scale=scale, token_block=tb),
        out_shape=jax.ShapeDtypeStruct((n_pad, e), table.dtype),
        grid_spec=pltpu.PrefetchScalarGridSpec(
            num_scalar_prefetch=1,                          # ids -> SMEM
            grid=(n_pad // tb,),
            in_specs=[pl.BlockSpec(memory_space=pl.ANY)],   # table stays in HBM
            out_specs=pl.BlockSpec((tb, e), lambda t, ids_ref: (t, 0)),
            scratch_shapes=[pltpu.VMEM((_N_SLOTS, e), table.dtype),
                            pltpu.SemaphoreType.DMA((_N_SLOTS,))],
        ),
        compiler_params=pltpu.CompilerParams(
            dimension_semantics=("parallel",),
            vmem_limit_bytes=vmem_limit),
    )(ids, table)
    return out[:n]


# ----------------------------------------------------------------------------
# Wrapper
# ----------------------------------------------------------------------------

def word_embedding(word, table, *, token_block=512, onehot_vocab_limit=1024,
                   vmem_resident_limit_bytes=None, max_tokens_per_call=32768):
    """word: int [B, S]; table: float [V, E]  ->  float [B, S, E]."""
    B, S = word.shape
    V, E = table.shape
    itemsize = jnp.dtype(table.dtype).itemsize
    scale = float(E) ** 0.5
    n_tok = B * S

    # Defensive clamp of untrusted ids (an OOB id would otherwise drive raw
    # VMEM indexing / HBM DMA with no defined result).  Note this silently
    # remaps bad ids where torch.nn.Embedding would raise.
    ids = jnp.clip(word.reshape(n_tok).astype(jnp.int32), 0, V - 1)

    # ---- Token tile size: sublane-dense, sized so double-buffered output
    # tiles stay within a few MiB even for large E (but keep TB reasonable). --
    tb_cap = max(256, (_TILE_OUT_BYTES // max(1, 2 * E * itemsize)) // 8 * 8)
    TB = min(token_block, tb_cap, _round_up(n_tok, 8))
    TB = max(8, _round_up(TB, 8))
    out_tile_bytes = TB * E * itemsize

    # ---- Generation-aware VMEM budgets (v5e/v6e: 128 MiB, v7x: 64 MiB/TC). --
    vmem_cap = _vmem_capacity_bytes()
    table_bytes = V * E * itemsize
    if vmem_resident_limit_bytes is None:
        # The constant-index table BlockSpec may still be double-buffered, so
        # budget 2x the table plus double-buffered output tiles plus slack.
        # TODO(synk): drop the 2x once pl.Buffered(1) on the table spec is
        # verified on every target generation.
        budget = int(0.70 * vmem_cap) - 2 * out_tile_bytes - (4 << 20)
        vmem_resident_limit_bytes = max(2 << 20, budget // 2)

    resident = table_bytes <= vmem_resident_limit_bytes
    slack = 4 << 20

    # One-hot MXU lookup is exact only for <=16-bit tables (single bf16 MXU
    # pass of an exact 0/1 one-hot); f32 tables take the exact gather path.
    # TODO(synk): extend the MXU path to exact f32 via precision=HIGHEST once
    # verified in the Mosaic dot lowering.
    if resident and V <= onehot_vocab_limit and itemsize <= 2:
        need = (2 * table_bytes + 2 * out_tile_bytes
                + TB * V * 4 + TB * E * 4 + slack)
        call = functools.partial(_call_onehot, tb=TB, scale=scale,
                                 vmem_limit=_clamp_vmem_limit(need, vmem_cap))
    elif resident:
        need = 2 * table_bytes + 2 * out_tile_bytes + slack
        call = functools.partial(_call_gather, tb=TB, scale=scale,
                                 vmem_limit=_clamp_vmem_limit(need, vmem_cap))
    else:
        need = 2 * out_tile_bytes + _N_SLOTS * E * itemsize + slack
        call = functools.partial(_call_row_dma, tb=TB, scale=scale,
                                 vmem_limit=_clamp_vmem_limit(need, vmem_cap))

    # ---- Chunk very long token streams so the scalar-prefetched id array
    # stays well inside SMEM (1-D SMEM pads to next_pow2(4N) bytes). ----------
    chunk = max(TB, (max_tokens_per_call // TB) * TB)
    if n_tok <= chunk:
        out_flat = call(ids, table)
    else:
        out_flat = jnp.concatenate(
            [call(ids[s:s + chunk], table) for s in range(0, n_tok, chunk)],
            axis=0)

    return out_flat.reshape(B, S, E)


if __name__ == "__main__":
    key = jax.random.PRNGKey(0)
    k_w, k_ids, k_w2, k_ids2 = jax.random.split(key, 4)

    batch, seq, emb_size = 2, 8, 128

    # --- Path 1: tiny bf16 vocab -> one-hot MXU path (exact for bf16). -------
    vocab1 = 32
    table1 = ((emb_size ** -0.5) * jax.random.normal(
        k_w, (vocab1, emb_size), dtype=jnp.float32)).astype(jnp.bfloat16)
    word1 = jax.random.randint(k_ids, (batch, seq), 0, vocab1, dtype=jnp.int32)
    out1 = jax.block_until_ready(word_embedding(word1, table1))
    ref1 = ((emb_size ** 0.5) * table1[word1].astype(jnp.float32)
            ).astype(jnp.bfloat16)
    assert out1.shape == (batch, seq, emb_size)
    assert out1.dtype == jnp.bfloat16
    assert jnp.allclose(out1.astype(jnp.float32), ref1.astype(jnp.float32),
                        atol=2e-2, rtol=2e-2), "one-hot path mismatch"

    # --- Path 2: f32 vocab -> VMEM-resident gather path (exact). -------------
    vocab2 = 4096
    table2 = (emb_size ** -0.5) * jax.random.normal(
        k_w2, (vocab2, emb_size), dtype=jnp.float32)
    word2 = jax.random.randint(k_ids2, (batch, seq), 0, vocab2, dtype=jnp.int32)
    out2 = jax.block_until_ready(word_embedding(word2, table2))
    ref2 = (emb_size ** 0.5) * table2[word2]
    assert jnp.allclose(out2, ref2, atol=1e-6, rtol=1e-6), "gather path mismatch"

    # --- Path 3: large-vocab manual row-DMA path, forced at small shape by
    # setting the residency limit to 0 (table stays in HBM). ------------------
    out3 = jax.block_until_ready(
        word_embedding(word2, table2, vmem_resident_limit_bytes=0))
    assert jnp.allclose(out3, ref2, atol=1e-6, rtol=1e-6), "row-DMA path mismatch"

    print("KERNEL_OK")
</pallas_src>

<mosaic_0001>
module attributes {stable_mosaic.version = 11 : i64} {
  func.func @_embed_onehot_kernel(%arg0: i32, %arg1: memref<16x1xi32, #tpu.memory_space<vmem>>, %arg2: memref<32x128xbf16, #tpu.memory_space<vmem>>, %arg3: memref<16x128xbf16, #tpu.memory_space<vmem>>) attributes {dimension_semantics = [#tpu.dimension_semantics<parallel>], iteration_bounds = array<i64: 1>, scalar_prefetch = 0 : i64, scratch_operands = 0 : i64, tpu.core_type = #tpu.core_type<tc>, window_params = [{transform_indices = @transform_0, window_bounds = array<i64: 16, 1>}, {pipeline_mode = #tpu.pipeline_mode<synchronous>, transform_indices = @transform_1, window_bounds = array<i64: 32, 128>}, {transform_indices = @transform_2, window_bounds = array<i64: 16, 128>}]} {
    %c0 = arith.constant 0 : index
    %c0_0 = arith.constant 0 : index
    %0 = vector.load %arg1[%c0, %c0_0] : memref<16x1xi32, #tpu.memory_space<vmem>>, vector<16x1xi32>
    %1 = tpu.iota {dimensions = array<i32: 1>} : vector<16x32xi32>
    %2 = vector.broadcast %0 : vector<16x1xi32> to vector<16x32xi32>
    %3 = arith.cmpi eq, %2, %1 : vector<16x32xi32>
    %4 = arith.extui %3 : vector<16x32xi1> to vector<16x32xi32>
    %5 = arith.sitofp %4 : vector<16x32xi32> to vector<16x32xf32>
    %6 = arith.truncf %5 : vector<16x32xf32> to vector<16x32xbf16>
    %c0_1 = arith.constant 0 : index
    %c0_2 = arith.constant 0 : index
    %7 = vector.load %arg2[%c0_1, %c0_2] : memref<32x128xbf16, #tpu.memory_space<vmem>>, vector<32x128xbf16>
    %cst = arith.constant dense<0.000000e+00> : vector<16x128xf32>
    %8 = tpu.matmul %6, %7, %cst {dimension_numbers = #tpu.dot_dimension_numbers<[1], [0], [0], [1], [0, 0, 1, 1], [], []>} : vector<16x32xbf16>, vector<32x128xbf16>, vector<16x128xf32> -> vector<16x128xf32>
    %cst_3 = arith.constant 11.3137083 : f32
    %9 = vector.broadcast %cst_3 : f32 to vector<16x128xf32>
    %10 = arith.mulf %8, %9 : vector<16x128xf32>
    %11 = arith.truncf %10 : vector<16x128xf32> to vector<16x128xbf16>
    %c0_4 = arith.constant 0 : index
    %c0_5 = arith.constant 0 : index
    %12 = vector.load %arg3[%c0_4, %c0_5] : memref<16x128xbf16, #tpu.memory_space<vmem>>, vector<16x128xbf16>
    tpu.vector_store %arg3[%c0_4, %c0_5], %11 {strides = array<i32>} : memref<16x128xbf16, #tpu.memory_space<vmem>>, vector<16x128xbf16>,
    return
  }
  func.func @transform_0(%arg0: i32) -> (i32, i32) {
    %c0_i32 = arith.constant 0 : i32
    %c0_i32_0 = arith.constant 0 : i32
    return %arg0, %c0_i32 : i32, i32
  }
  func.func @transform_1(%arg0: i32) -> (i32, i32) {
    %c0_i32 = arith.constant 0 : i32
    %c0_i32_0 = arith.constant 0 : i32
    %c0_i32_1 = arith.constant 0 : i32
    return %c0_i32, %c0_i32_0 : i32, i32
  }
  func.func @transform_2(%arg0: i32) -> (i32, i32) {
    %c0_i32 = arith.constant 0 : i32
    %c0_i32_0 = arith.constant 0 : i32
    return %arg0, %c0_i32 : i32, i32
  }
}

</mosaic_0001>

<llo_original>
// kernel: tpu_custom_call.1
$region0: #{tpu_custom_call.1}
  #allocation0 [shape = 'u32[]', space=smem, size = 0x4, offset = 0x4, fixed_abs, tag = 'smem constant byte address 0x4 - core index']
  #allocation1 [shape = 'u32[144,128]{1,0:T(1,128)}', space=vmem, size = 0x12000, scoped, tag = 'internal scratch']
  %s0 = inlined_call_operand.vmem [shape: s32[16,1], index: 0, kind: input, shape index: {}]
  %s1 = inlined_call_operand.vmem [shape: bf16[32,128], index: 1, kind: input, shape index: {}]
  %s2 = inlined_call_operand.hbm [shape: bf16[16,128], index: 2, kind: output, shape index: {}]
  %s3 = sld [smem:[#allocation0]]
  $region18: #{tpu_custom_call.1} parent=0
    _
  %s5 = ssub.s32 1, %s3
  %s6 = scalar_select 0, %s5, %s3
  $region1: #{tpu_custom_call.1} parent=0
    #allocation2 [shape = 'u8[4096]{0}', space=vmem, size = 0x1000, scoped, tag = 'output window, operand 0, single buffered']
    #allocation3 [shape = 's32[1]{0}', space=sflag, size = 0x4, scoped, tag = 'scoped memory for tpu_custom_call.1']
    %7 = vsyncpa [#allocation3], 0
    // Predicated region
    $region2: #{tpu_custom_call.1} parent=1 // pred_check
      _
    $region3: #{tpu_custom_call.1} parent=1 // pred_check_branch
      %9 = sbr.rel (0) target = $region5
    $region4: #{tpu_custom_call.1} parent=1 // pred_region
      _
    $region5: #{tpu_custom_call.1} parent=1 // pred_fallthru
      _
    // Predicated region
    $region6: #{tpu_custom_call.1} parent=1 // pred_check
      _
    $region7: #{tpu_custom_call.1} parent=1 // pred_check_branch
      %11 = sbr.rel (0) target = $region9
    $region8: #{tpu_custom_call.1} parent=1 // pred_region
      _
    $region9: #{tpu_custom_call.1} parent=1 // pred_fallthru
      _
    %v13 = vld [vmem:[%s0] sm:$0xff]
    %v14 = vld [vmem:[%s0 + $0x8] sm:$0xff]
    %v15 = vlaneseq
    %v16 = vand.u32 %v15, 127
    %17 = vset.pattern.permute.xlu0 0
    %18 = vperm.xlu0 %17, %v13
    %v19 = vpop.permute.xlu0 %18
    %20 = vset.pattern.permute.xlu0 0
    %21 = vperm.xlu0 %20, %v14
    %v22 = vpop.permute.xlu0 %21
    %vm23 = vcmp.eq.s32.totalorder %v19, %v16
    %vm24 = vcmp.eq.s32.totalorder %v22, %v16
    %v25 = vsel %vm23, 1, 0
    %v26 = vsel %vm24, 1, 0
    %v27 = vcvt.s32.f32 %v25
    %v28 = vcvt.s32.f32 %v26
    %v29 = vpack.c.bf16 %v28, %v27
    %v30 = vld [vmem:[%s1] sm:$0xf]
    %v31 = vld [vmem:[%s1 + $0x4] sm:$0xf]
    %v32 = vld [vmem:[%s1 + $0x8] sm:$0xf]
    %v33 = vld [vmem:[%s1 + $0xc] sm:$0xf]
    %v38 = vunpack.c.l.b16 %v30
    %v39 = vunpack.c.l.b16 %v31
    %v40 = vunpack.c.l.b16 %v32
    %v41 = vunpack.c.l.b16 %v33
    %v42 = vpack.c.b16 %v39, %v38
    %v43 = vpack.c.b16 %v41, %v40
    %vm46 = vcmask 261120
    %v48 = vsel %vm46, %v29, 0
    %50 = vmatprep.subr.bf16.mxu0 0
    %51 = vmatpush1.bf16.msra.mxu0 %v42
    %52 = vmatprep.subr.bf16.mxu0 0
    %53 = vmatpush1.bf16.msra.mxu0 %v43
    %54 = vmatprep.subr.bf16.mxu0 0
    %55 = vmatpush1.bf16.msra.mxu0 0
    %56 = vmatprep.subr.bf16.mxu0 0
    %57 = vmatpush1.bf16.msra.mxu0 0
    %58 = vmatprep.subr.bf16.mxu0 0
    %59 = vmatpush1.bf16.msra.mxu0 0
    %60 = vmatprep.subr.bf16.mxu0 0
    %61 = vmatpush1.bf16.msra.mxu0 0
    %62 = vmatprep.subr.bf16.mxu0 0
    %63 = vmatpush1.bf16.msra.mxu0 0
    %64 = vmatprep.subr.bf16.mxu0 0
    %65 = vmatpush1.bf16.msra.mxu0 0
    %66 = vmatprep.subr.bf16.mxu0 0
    %67 = vmatpush1.bf16.msra.mxu0 0
    %68 = vmatprep.subr.bf16.mxu0 0
    %69 = vmatpush1.bf16.msra.mxu0 0
    %70 = vmatprep.subr.bf16.mxu0 0
    %71 = vmatpush1.bf16.msra.mxu0 0
    %72 = vmatprep.subr.bf16.mxu0 0
    %73 = vmatpush1.bf16.msra.mxu0 0
    %74 = vmatprep.subr.bf16.mxu0 0
    %75 = vmatpush1.bf16.msra.mxu0 0
    %76 = vmatprep.subr.bf16.mxu0 0
    %77 = vmatpush1.bf16.msra.mxu0 0
    %78 = vmatprep.subr.bf16.mxu0 0
    %79 = vmatpush1.bf16.msra.mxu0 0
    %80 = vmatprep.subr.bf16.mxu0 0
    %81 = vmatpush1.bf16.msra.mxu0 0
    %82 = vmatprep.mubr.bf16.mxu0 0
    %83 = vmatmul.mubr.bf16.gmra.mrb[0].mxu0 %v48
    %v84 = vpop.f32.mrb[0].mxu0
    %v85 = vadd.f32 0.0, %v84
    %v86 = vpop.f32.mrb[0].mxu0
    %v87 = vpop.f32.mrb[0].mxu0
    %v88 = vadd.f32 0.0, %v87
    %v89 = vpop.f32.mrb[0].mxu0
    %90 = vdwg.mxu0
    %v91 = vmul.f32 %v85, 11.313708
    %v92 = vmul.f32 %v88, 11.313708
    %v93 = vpack.c.bf16 %v92, %v91
    %v95 = vunpack.c.l.b16 %v93
    %v96 = vunpack.c.h.b16 %v93
    %v97 = vpack.c.b16 %v95, %v95
    %v98 = vpack.c.b16 %v96, %v96
    %101 = vst [vmem:[#allocation2] sm:$0xf] %v97
    %102 = vst [vmem:[#allocation2 + $0x4] sm:$0xf] %v98
    // Predicated region
    $region10: #{tpu_custom_call.1} parent=1 // pred_check
      _
    $region11: #{tpu_custom_call.1} parent=1 // pred_check_branch
      %104 = sbr.rel (0) target = $region13
    $region12: #{tpu_custom_call.1} parent=1 // pred_region
      %s106 = ssub.s32 128, 128
      %107 = vsyncadd [#allocation3], %s106
      %s108 = sshll.u32 [#allocation2], 4
      %s109 = int_to_ptr.vmem [resolvable:$true] %s108
      %114 = dma.vmem_to_hbm [thread:$0]  %s109, 128, %s2, [#allocation3], 64, 64, 4
    $region13: #{tpu_custom_call.1} parent=1 // pred_fallthru
      _
    // Predicated region
    $region14: #{tpu_custom_call.1} parent=1 // pred_check
      _
    $region15: #{tpu_custom_call.1} parent=1 // pred_check_branch
      %116 = sbr.rel (0) target = $region17
    $region16: #{tpu_custom_call.1} parent=1 // pred_region
      %117 = dma.done [#allocation3], 128
    $region17: #{tpu_custom_call.1} parent=1 // pred_fallthru
      _
    %118 = vsyncpa [#allocation3], 1

</llo_original>
